<compile_context>
chip_gen: v5e
topology: v5e:2x2
jax: 0.10.0
libtpu: 0.0.40
codegen_flags: <defaults>
</compile_context>

<pallas_src>
import functools

import jax
import jax.numpy as jnp
from jax.experimental import pallas as pl
from jax.experimental.pallas import tpu as pltpu


def _round_up(x: int, m: int) -> int:
    return ((x + m - 1) // m) * m


def _regression_head_kernel(x_ref, w1_ref, b1_ref, w2_ref, b2_ref, o_ref):
    # x_ref : (TM, Hp)   w1_ref: (Hp, Hp)   b1_ref: (1, Hp)
    # w2_ref: (Hp, Lp)   b2_ref: (1, Lp)    o_ref : (TM, Lp)
    x = x_ref[...]
    # dense: MXU matmul with f32 accumulate, bias add + tanh in f32 (EUP)
    h = jnp.dot(x, w1_ref[...], preferred_element_type=jnp.float32) + b1_ref[...]
    h = jnp.tanh(h)
    # out_proj: cast LHS to the weight dtype (no-op for f32, bf16 on the fast path)
    y = jnp.dot(h.astype(w2_ref.dtype), w2_ref[...],
                preferred_element_type=jnp.float32) + b2_ref[...]
    o_ref[...] = y.astype(o_ref.dtype)


def regression_head(features, w_dense, b_dense, w_out, b_out,
                    *, tm: int = 1024, matmul_dtype=None):
    """features: (B, T, H). w_dense: (H, H) [in, out], b_dense: (H,),
    w_out: (H, L) [in, out], b_out: (L,).

    matmul_dtype: set to jnp.bfloat16 on v6e/v7x for the MXU fast path
    (accumulation, bias add and tanh remain f32). Default None keeps f32.
    """
    B, T, H = features.shape
    L = w_out.shape[1]
    M = B * T

    # Lane-dense padding of the contraction (K=H) and output (N=L) dims.
    Hp = _round_up(H, 128)
    Lp = _round_up(L, 128)

    x2d = features.reshape(M, H)
    if Hp != H:
        x2d = jnp.pad(x2d, ((0, 0), (0, Hp - H)))
        w1 = jnp.pad(w_dense, ((0, Hp - H), (0, Hp - H)))
        b1 = jnp.pad(b_dense, (0, Hp - H)).reshape(1, Hp)
        w2 = jnp.pad(w_out, ((0, Hp - H), (0, Lp - L)))
    else:
        w1 = w_dense
        b1 = b_dense.reshape(1, Hp)
        w2 = jnp.pad(w_out, ((0, 0), (0, Lp - L))) if Lp != L else w_out
    b2 = jnp.pad(b_out, (0, Lp - L)).reshape(1, Lp) if Lp != L else b_out.reshape(1, Lp)

    if matmul_dtype is not None:
        x2d = x2d.astype(matmul_dtype)
        w1 = w1.astype(matmul_dtype)
        w2 = w2.astype(matmul_dtype)

    # Tile over M; clamp for tiny inputs (block must be a multiple of 8 sublanes).
    tm_eff = min(tm, _round_up(M, 8))
    grid = (pl.cdiv(M, tm_eff),)

    out_dtype = features.dtype
    bytes_per = jnp.dtype(x2d.dtype).itemsize
    cost = pl.CostEstimate(
        flops=2 * M * Hp * (Hp + Lp),
        transcendentals=M * Hp,
        bytes_accessed=(M * Hp * bytes_per            # x read
                        + Hp * Hp * bytes_per         # w_dense
                        + Hp * 4                      # b_dense (f32)
                        + Hp * Lp * bytes_per         # w_out
                        + Lp * 4                      # b_out (f32)
                        + M * Lp * 4),                # output write (f32)
    )

    out2d = pl.pallas_call(
        _regression_head_kernel,
        out_shape=jax.ShapeDtypeStruct((M, Lp), out_dtype),
        grid_spec=pltpu.PrefetchScalarGridSpec(
            num_scalar_prefetch=0,
            grid=grid,
            in_specs=[
                pl.BlockSpec((tm_eff, Hp), lambda i: (i, 0)),   # x tile (pipelined)
                pl.BlockSpec((Hp, Hp), lambda i: (0, 0)),       # w_dense (resident)
                pl.BlockSpec((1, Hp), lambda i: (0, 0)),        # b_dense (resident)
                pl.BlockSpec((Hp, Lp), lambda i: (0, 0)),       # w_out   (resident)
                pl.BlockSpec((1, Lp), lambda i: (0, 0)),        # b_out   (resident)
            ],
            out_specs=pl.BlockSpec((tm_eff, Lp), lambda i: (i, 0)),
        ),
        compiler_params=pltpu.CompilerParams(
            dimension_semantics=("parallel",)),   # M tiles are independent -> multi-TC OK
        cost_estimate=cost,
    )(x2d, w1, b1, w2, b2)

    return out2d[:, :L].reshape(B, T, L)


if __name__ == "__main__":
    # Small shapes consistent with the module:
    #   hidden_size = 32, num_labels = 4, batch = 2, seq = 8
    B, T, H, L = 2, 8, 32, 4

    key = jax.random.PRNGKey(0)
    k_x, k_w1, k_b1, k_w2, k_b2 = jax.random.split(key, 5)

    features = jax.random.normal(k_x, (B, T, H), dtype=jnp.float32)

    # Deterministic parameter init (PyTorch Linear-style uniform bound).
    bound1 = 1.0 / (H ** 0.5)
    w_dense = jax.random.uniform(k_w1, (H, H), jnp.float32, -bound1, bound1)
    b_dense = jax.random.uniform(k_b1, (H,), jnp.float32, -bound1, bound1)
    w_out = jax.random.uniform(k_w2, (H, L), jnp.float32, -bound1, bound1)
    b_out = jax.random.uniform(k_b2, (L,), jnp.float32, -bound1, bound1)

    run = jax.jit(functools.partial(regression_head, tm=1024, matmul_dtype=None))
    out = jax.block_until_ready(run(features, w_dense, b_dense, w_out, b_out))

    # Pure-JAX reference (dropout is identity in eval mode).
    ref = jnp.tanh(features @ w_dense + b_dense) @ w_out + b_out
    assert out.shape == (B, T, L)
    assert jnp.allclose(out, ref, atol=1e-5, rtol=1e-5)

    print("KERNEL_OK")
</pallas_src>

<mosaic_0001>
module attributes {stable_mosaic.version = 11 : i64} {
  func.func @_regression_head_kernel(%arg0: i32, %arg1: memref<16x128xf32, #tpu.memory_space<vmem>>, %arg2: memref<128x128xf32, #tpu.memory_space<vmem>>, %arg3: memref<1x128xf32, #tpu.memory_space<vmem>>, %arg4: memref<128x128xf32, #tpu.memory_space<vmem>>, %arg5: memref<1x128xf32, #tpu.memory_space<vmem>>, %arg6: memref<16x128xf32, #tpu.memory_space<vmem>>) attributes {dimension_semantics = [#tpu.dimension_semantics<parallel>], iteration_bounds = array<i64: 1>, scalar_prefetch = 0 : i64, scratch_operands = 0 : i64, tpu.core_type = #tpu.core_type<tc>, window_params = [{transform_indices = @transform_0, window_bounds = array<i64: 16, 128>}, {pipeline_mode = #tpu.pipeline_mode<synchronous>, transform_indices = @transform_1, window_bounds = array<i64: 128, 128>}, {pipeline_mode = #tpu.pipeline_mode<synchronous>, transform_indices = @transform_2, window_bounds = array<i64: 1, 128>}, {pipeline_mode = #tpu.pipeline_mode<synchronous>, transform_indices = @transform_3, window_bounds = array<i64: 128, 128>}, {pipeline_mode = #tpu.pipeline_mode<synchronous>, transform_indices = @transform_4, window_bounds = array<i64: 1, 128>}, {transform_indices = @transform_5, window_bounds = array<i64: 16, 128>}]} {
    %c0 = arith.constant 0 : index
    %c0_0 = arith.constant 0 : index
    %0 = vector.load %arg1[%c0, %c0_0] : memref<16x128xf32, #tpu.memory_space<vmem>>, vector<16x128xf32>
    %c0_1 = arith.constant 0 : index
    %c0_2 = arith.constant 0 : index
    %1 = vector.load %arg2[%c0_1, %c0_2] : memref<128x128xf32, #tpu.memory_space<vmem>>, vector<128x128xf32>
    %cst = arith.constant dense<0.000000e+00> : vector<16x128xf32>
    %2 = tpu.matmul %0, %1, %cst {dimension_numbers = #tpu.dot_dimension_numbers<[1], [0], [0], [1], [0, 0, 1, 1], [], []>} : vector<16x128xf32>, vector<128x128xf32>, vector<16x128xf32> -> vector<16x128xf32>
    %c0_3 = arith.constant 0 : index
    %c0_4 = arith.constant 0 : index
    %3 = vector.load %arg3[%c0_3, %c0_4] : memref<1x128xf32, #tpu.memory_space<vmem>>, vector<1x128xf32>
    %4 = vector.broadcast %3 : vector<1x128xf32> to vector<16x128xf32>
    %5 = arith.addf %2, %4 : vector<16x128xf32>
    %6 = math.tanh %5 : vector<16x128xf32>
    %c0_5 = arith.constant 0 : index
    %c0_6 = arith.constant 0 : index
    %7 = vector.load %arg4[%c0_5, %c0_6] : memref<128x128xf32, #tpu.memory_space<vmem>>, vector<128x128xf32>
    %cst_7 = arith.constant dense<0.000000e+00> : vector<16x128xf32>
    %8 = tpu.matmul %6, %7, %cst_7 {dimension_numbers = #tpu.dot_dimension_numbers<[1], [0], [0], [1], [0, 0, 1, 1], [], []>} : vector<16x128xf32>, vector<128x128xf32>, vector<16x128xf32> -> vector<16x128xf32>
    %c0_8 = arith.constant 0 : index
    %c0_9 = arith.constant 0 : index
    %9 = vector.load %arg5[%c0_8, %c0_9] : memref<1x128xf32, #tpu.memory_space<vmem>>, vector<1x128xf32>
    %10 = vector.broadcast %9 : vector<1x128xf32> to vector<16x128xf32>
    %11 = arith.addf %8, %10 : vector<16x128xf32>
    %c0_10 = arith.constant 0 : index
    %c0_11 = arith.constant 0 : index
    %12 = vector.load %arg6[%c0_10, %c0_11] : memref<16x128xf32, #tpu.memory_space<vmem>>, vector<16x128xf32>
    tpu.vector_store %arg6[%c0_10, %c0_11], %11 {strides = array<i32>} : memref<16x128xf32, #tpu.memory_space<vmem>>, vector<16x128xf32>,
    return
  }
  func.func @transform_0(%arg0: i32) -> (i32, i32) {
    %c0_i32 = arith.constant 0 : i32
    %c0_i32_0 = arith.constant 0 : i32
    return %arg0, %c0_i32 : i32, i32
  }
  func.func @transform_1(%arg0: i32) -> (i32, i32) {
    %c0_i32 = arith.constant 0 : i32
    %c0_i32_0 = arith.constant 0 : i32
    %c0_i32_1 = arith.constant 0 : i32
    return %c0_i32, %c0_i32_0 : i32, i32
  }
  func.func @transform_2(%arg0: i32) -> (i32, i32) {
    %c0_i32 = arith.constant 0 : i32
    %c0_i32_0 = arith.constant 0 : i32
    %c0_i32_1 = arith.constant 0 : i32
    return %c0_i32, %c0_i32_0 : i32, i32
  }
  func.func @transform_3(%arg0: i32) -> (i32, i32) {
    %c0_i32 = arith.constant 0 : i32
    %c0_i32_0 = arith.constant 0 : i32
    %c0_i32_1 = arith.constant 0 : i32
    return %c0_i32, %c0_i32_0 : i32, i32
  }
  func.func @transform_4(%arg0: i32) -> (i32, i32) {
    %c0_i32 = arith.constant 0 : i32
    %c0_i32_0 = arith.constant 0 : i32
    %c0_i32_1 = arith.constant 0 : i32
    return %c0_i32, %c0_i32_0 : i32, i32
  }
  func.func @transform_5(%arg0: i32) -> (i32, i32) {
    %c0_i32 = arith.constant 0 : i32
    %c0_i32_0 = arith.constant 0 : i32
    return %arg0, %c0_i32 : i32, i32
  }
}

</mosaic_0001>

<llo_original>
// kernel: regression_head.1
$region0: #{regression_head.1}
  #allocation0 [shape = 'u32[]', space=smem, size = 0x4, offset = 0x4, fixed_abs, tag = 'smem constant byte address 0x4 - core index']
  #allocation1 [shape = 'u32[72,128]{1,0:T(1,128)}', space=vmem, size = 0x9000, scoped, tag = 'internal scratch']
  %s0 = inlined_call_operand.vmem [shape: f32[16,128], index: 0, kind: input, shape index: {}]
  %s1 = inlined_call_operand.vmem [shape: f32[128,128], index: 1, kind: input, shape index: {}]
  %s2 = inlined_call_operand.vmem [shape: f32[1,128], index: 2, kind: input, shape index: {}]
  %s3 = inlined_call_operand.vmem [shape: f32[128,128], index: 3, kind: input, shape index: {}]
  %s4 = inlined_call_operand.vmem [shape: f32[1,128], index: 4, kind: input, shape index: {}]
  %s5 = inlined_call_operand.vmem [shape: f32[16,128], index: 5, kind: output, shape index: {}]
  %s6 = sld [smem:[#allocation0]]
  $region30: #{regression_head.1} parent=0
    _
  %s8 = ssub.s32 1, %s6
  %s9 = scalar_select 0, %s8, %s6
  // Predicated region
  $region2: #{regression_head.1} parent=0 // pred_check
    _
  $region3: #{regression_head.1} parent=0 // pred_check_branch
    %11 = sbr.rel (0) target = $region5
  $region4: #{regression_head.1} parent=0 // pred_region
    _
  $region5: #{regression_head.1} parent=0 // pred_fallthru
    _
  // Predicated region
  $region6: #{regression_head.1} parent=0 // pred_check
    _
  $region7: #{regression_head.1} parent=0 // pred_check_branch
    %13 = sbr.rel (0) target = $region9
  $region8: #{regression_head.1} parent=0 // pred_region
    _
  $region9: #{regression_head.1} parent=0 // pred_fallthru
    _
  // Predicated region
  $region10: #{regression_head.1} parent=0 // pred_check
    _
  $region11: #{regression_head.1} parent=0 // pred_check_branch
    %15 = sbr.rel (0) target = $region13
  $region12: #{regression_head.1} parent=0 // pred_region
    _
  $region13: #{regression_head.1} parent=0 // pred_fallthru
    _
  // Predicated region
  $region14: #{regression_head.1} parent=0 // pred_check
    _
  $region15: #{regression_head.1} parent=0 // pred_check_branch
    %17 = sbr.rel (0) target = $region17
  $region16: #{regression_head.1} parent=0 // pred_region
    _
  $region17: #{regression_head.1} parent=0 // pred_fallthru
    _
  // Predicated region
  $region18: #{regression_head.1} parent=0 // pred_check
    _
  $region19: #{regression_head.1} parent=0 // pred_check_branch
    %19 = sbr.rel (0) target = $region21
  $region20: #{regression_head.1} parent=0 // pred_region
    _
  $region21: #{regression_head.1} parent=0 // pred_fallthru
    _
  %v20 = vld [vmem:[%s0] sm:$0xff]
  %v21 = vld [vmem:[%s0 + $0x8] sm:$0xff]
  %v22 = vld [vmem:[%s1] sm:$0xff]
  %v23 = vld [vmem:[%s1 + $0x8] sm:$0xff]
  %v24 = vld [vmem:[%s1 + $0x10] sm:$0xff]
  %v25 = vld [vmem:[%s1 + $0x18] sm:$0xff]
  %v26 = vld [vmem:[%s1 + $0x20] sm:$0xff]
  %v27 = vld [vmem:[%s1 + $0x28] sm:$0xff]
  %v28 = vld [vmem:[%s1 + $0x30] sm:$0xff]
  %v29 = vld [vmem:[%s1 + $0x38] sm:$0xff]
  %v30 = vld [vmem:[%s1 + $0x40] sm:$0xff]
  %v31 = vld [vmem:[%s1 + $0x48] sm:$0xff]
  %v32 = vld [vmem:[%s1 + $0x50] sm:$0xff]
  %v33 = vld [vmem:[%s1 + $0x58] sm:$0xff]
  %v34 = vld [vmem:[%s1 + $0x60] sm:$0xff]
  %v35 = vld [vmem:[%s1 + $0x68] sm:$0xff]
  %v36 = vld [vmem:[%s1 + $0x70] sm:$0xff]
  %v37 = vld [vmem:[%s1 + $0x78] sm:$0xff]
  %v38 = vld [vmem:[%s2] sm:$0x1]
  %v40 = vperm.slane %v38, 0
  %42 = vmatpush.msra.mxu0 %v37
  %43 = vmatpush.msra.mxu0 %v36
  %44 = vmatpush.msra.mxu0 %v35
  %45 = vmatpush.msra.mxu0 %v34
  %46 = vmatpush.msra.mxu0 %v33
  %47 = vmatpush.msra.mxu0 %v32
  %48 = vmatpush.msra.mxu0 %v31
  %49 = vmatpush.msra.mxu0 %v30
  %50 = vmatpush.msra.mxu0 %v29
  %51 = vmatpush.msra.mxu0 %v28
  %52 = vmatpush.msra.mxu0 %v27
  %53 = vmatpush.msra.mxu0 %v26
  %54 = vmatpush.msra.mxu0 %v25
  %55 = vmatpush.msra.mxu0 %v24
  %56 = vmatpush.msra.mxu0 %v23
  %57 = vmatpush.msra.mxu0 %v22
  %58 = vmatmul.f32.gmra.mxu0 %v20
  %v59 = vpop.f32.mrf.mxu0
  %v60 = vadd.f32 %v40, %v59
  %61 = vmatmul.f32.gmra.mxu0 %v21
  %v62 = vpop.f32.mrf.mxu0
  %v63 = vadd.f32 %v40, %v62
  %64 = vdwg.mxu0
  %v65 = vtanh.pop %v60
  %v66 = vtanh.pop %v63
  %v67 = vld [vmem:[%s3] sm:$0xff]
  %v68 = vld [vmem:[%s3 + $0x8] sm:$0xff]
  %v69 = vld [vmem:[%s3 + $0x10] sm:$0xff]
  %v70 = vld [vmem:[%s3 + $0x18] sm:$0xff]
  %v71 = vld [vmem:[%s3 + $0x20] sm:$0xff]
  %v72 = vld [vmem:[%s3 + $0x28] sm:$0xff]
  %v73 = vld [vmem:[%s3 + $0x30] sm:$0xff]
  %v74 = vld [vmem:[%s3 + $0x38] sm:$0xff]
  %v75 = vld [vmem:[%s3 + $0x40] sm:$0xff]
  %v76 = vld [vmem:[%s3 + $0x48] sm:$0xff]
  %v77 = vld [vmem:[%s3 + $0x50] sm:$0xff]
  %v78 = vld [vmem:[%s3 + $0x58] sm:$0xff]
  %v79 = vld [vmem:[%s3 + $0x60] sm:$0xff]
  %v80 = vld [vmem:[%s3 + $0x68] sm:$0xff]
  %v81 = vld [vmem:[%s3 + $0x70] sm:$0xff]
  %v82 = vld [vmem:[%s3 + $0x78] sm:$0xff]
  %v83 = vld [vmem:[%s4] sm:$0x1]
  %v85 = vperm.slane %v83, 0
  %87 = vmatpush.msra.mxu0 %v82
  %88 = vmatpush.msra.mxu0 %v81
  %89 = vmatpush.msra.mxu0 %v80
  %90 = vmatpush.msra.mxu0 %v79
  %91 = vmatpush.msra.mxu0 %v78
  %92 = vmatpush.msra.mxu0 %v77
  %93 = vmatpush.msra.mxu0 %v76
  %94 = vmatpush.msra.mxu0 %v75
  %95 = vmatpush.msra.mxu0 %v74
  %96 = vmatpush.msra.mxu0 %v73
  %97 = vmatpush.msra.mxu0 %v72
  %98 = vmatpush.msra.mxu0 %v71
  %99 = vmatpush.msra.mxu0 %v70
  %100 = vmatpush.msra.mxu0 %v69
  %101 = vmatpush.msra.mxu0 %v68
  %102 = vmatpush.msra.mxu0 %v67
  %103 = vmatmul.f32.gmra.mxu0 %v65
  %v104 = vpop.f32.mrf.mxu0
  %v105 = vadd.f32 %v85, %v104
  %106 = vmatmul.f32.gmra.mxu0 %v66
  %v107 = vpop.f32.mrf.mxu0
  %v108 = vadd.f32 %v85, %v107
  %109 = vdwg.mxu0
  %110 = vst [vmem:[%s5] sm:$0xff] %v105
  %111 = vst [vmem:[%s5 + $0x8] sm:$0xff] %v108
  // Predicated region
  $region22: #{regression_head.1} parent=0 // pred_check
    _
  $region23: #{regression_head.1} parent=0 // pred_check_branch
    %113 = sbr.rel (0) target = $region25
  $region24: #{regression_head.1} parent=0 // pred_region
    _
  $region25: #{regression_head.1} parent=0 // pred_fallthru
    _
  // Predicated region
  $region26: #{regression_head.1} parent=0 // pred_check
    _
  $region27: #{regression_head.1} parent=0 // pred_check_branch
    %115 = sbr.rel (0) target = $region29
  $region28: #{regression_head.1} parent=0 // pred_region
    _
  $region29: #{regression_head.1} parent=0 // pred_fallthru
    _

</llo_original>
